<compile_context>
chip_gen: v7x
topology: tpu7x:2x2x1
jax: 0.10.0
libtpu: 0.0.40
codegen_flags: <defaults>
</compile_context>

<pallas_src>
import functools
import math

import jax
import jax.numpy as jnp
from jax.experimental import pallas as pl
from jax.experimental.pallas import tpu as pltpu

F32 = jnp.float32


def _vmem():
    return pl.BlockSpec(memory_space=pltpu.MemorySpace.VMEM)


# ----------------------------------------------------------------------------- kernel

def _attention_fusion_kernel(x1_ref, x2_ref, w_ref, b_ref, o_ref, *, n1):
    """out = relu(cat(x1, x2, axis=1) @ W^T + b), without materializing the concat.

    x1_ref: [B, n1]   x2_ref: [B, n1]
    w_ref : [2*n1, n2]  (pre-transposed Linear weight)
    b_ref : [1, n2]
    o_ref : [B, n2]
    """
    x1 = x1_ref[...]
    x2 = x2_ref[...]
    # Static row-block slices of the weight (n1 is a multiple of 8 -> aligned).
    w1 = w_ref[:n1, :]
    w2 = w_ref[n1:, :]

    acc = jnp.dot(x1, w1, preferred_element_type=jnp.float32)
    acc = acc + jnp.dot(x2, w2, preferred_element_type=jnp.float32)
    acc = acc + b_ref[...]
    o_ref[...] = jnp.maximum(acc, 0.0)


def attention_fusion_forward(x1, x2, w_t, b):
    """x1: [B, n1], x2: [B, n1], w_t: [2*n1, n2] (W^T), b: [1, n2] -> [B, n2]."""
    batch, n1 = x1.shape
    n2 = w_t.shape[1]
    return pl.pallas_call(
        functools.partial(_attention_fusion_kernel, n1=n1),
        out_shape=jax.ShapeDtypeStruct((batch, n2), F32),
        in_specs=[_vmem(), _vmem(), _vmem(), _vmem()],
        out_specs=_vmem(),
        compiler_params=pltpu.CompilerParams(vmem_limit_bytes=16 << 20),
    )(x1, x2, w_t, b)


# ----------------------------------------------------------------------------- params

def init_params(key, n_dim_input1, n_dim_input2):
    """Matches nn.Linear(2*n1, n2) default init: U(-1/sqrt(fan_in), 1/sqrt(fan_in)).

    Weight is stored pre-transposed as [2*n1, n2] so the kernel computes x @ W^T.
    """
    fan_in = 2 * n_dim_input1
    bound = 1.0 / math.sqrt(fan_in)
    kw, kb = jax.random.split(key)
    w_t = jax.random.uniform(kw, (fan_in, n_dim_input2), F32, -bound, bound)
    b = jax.random.uniform(kb, (1, n_dim_input2), F32, -bound, bound)
    return w_t, b


# ----------------------------------------------------------------------------- main

if __name__ == "__main__":
    key = jax.random.PRNGKey(0)
    k_params, k_x1, k_x2 = jax.random.split(key, 3)

    B = 2                   # batch
    N_DIM_INPUT1 = 128      # lane-aligned feature dims (multiples of 128)
    N_DIM_INPUT2 = 128

    w_t, b = init_params(k_params, N_DIM_INPUT1, N_DIM_INPUT2)
    x1 = jax.random.normal(k_x1, (B, N_DIM_INPUT1), F32)
    x2 = jax.random.normal(k_x2, (B, N_DIM_INPUT1), F32)

    out = attention_fusion_forward(x1, x2, w_t, b)
    out = jax.block_until_ready(out)

    # Pure-JAX reference (exact semantics of the PyTorch forward, eval mode).
    ref = jax.nn.relu(jnp.concatenate([x1, x2], axis=1) @ w_t + b)
    ref = jax.block_until_ready(ref)

    assert out.shape == (B, N_DIM_INPUT2)
    assert bool(jnp.all(jnp.isfinite(out)))
    assert bool(jnp.all(out >= 0.0))
    assert bool(jnp.allclose(out, ref, atol=1e-5, rtol=1e-5))
    print("KERNEL_OK")
</pallas_src>

<mosaic_0001>
module attributes {stable_mosaic.version = 11 : i64} {
  func.func @_attention_fusion_kernel(%arg0: memref<2x128xf32, #tpu.memory_space<vmem>>, %arg1: memref<2x128xf32, #tpu.memory_space<vmem>>, %arg2: memref<256x128xf32, #tpu.memory_space<vmem>>, %arg3: memref<1x128xf32, #tpu.memory_space<vmem>>, %arg4: memref<2x128xf32, #tpu.memory_space<vmem>>) attributes {dimension_semantics = [], scalar_prefetch = 0 : i64, scratch_operands = 0 : i64, tpu.core_type = #tpu.core_type<tc>} {
    %c0 = arith.constant 0 : index
    %c0_0 = arith.constant 0 : index
    %0 = vector.load %arg0[%c0, %c0_0] : memref<2x128xf32, #tpu.memory_space<vmem>>, vector<2x128xf32>
    %c0_1 = arith.constant 0 : index
    %c0_2 = arith.constant 0 : index
    %1 = vector.load %arg1[%c0_1, %c0_2] : memref<2x128xf32, #tpu.memory_space<vmem>>, vector<2x128xf32>
    %c0_3 = arith.constant 0 : index
    %c0_4 = arith.constant 0 : index
    %2 = vector.load %arg2[%c0_3, %c0_4] : memref<256x128xf32, #tpu.memory_space<vmem>>, vector<128x128xf32>
    %c128 = arith.constant 128 : index
    %c0_5 = arith.constant 0 : index
    %3 = vector.load %arg2[%c128, %c0_5] : memref<256x128xf32, #tpu.memory_space<vmem>>, vector<128x128xf32>
    %cst = arith.constant dense<0.000000e+00> : vector<2x128xf32>
    %4 = tpu.matmul %0, %2, %cst {dimension_numbers = #tpu.dot_dimension_numbers<[1], [0], [0], [1], [0, 0, 1, 1], [], []>} : vector<2x128xf32>, vector<128x128xf32>, vector<2x128xf32> -> vector<2x128xf32>
    %cst_6 = arith.constant dense<0.000000e+00> : vector<2x128xf32>
    %5 = tpu.matmul %1, %3, %cst_6 {dimension_numbers = #tpu.dot_dimension_numbers<[1], [0], [0], [1], [0, 0, 1, 1], [], []>} : vector<2x128xf32>, vector<128x128xf32>, vector<2x128xf32> -> vector<2x128xf32>
    %6 = arith.addf %4, %5 : vector<2x128xf32>
    %c0_7 = arith.constant 0 : index
    %c0_8 = arith.constant 0 : index
    %7 = vector.load %arg3[%c0_7, %c0_8] : memref<1x128xf32, #tpu.memory_space<vmem>>, vector<1x128xf32>
    %8 = vector.broadcast %7 : vector<1x128xf32> to vector<2x128xf32>
    %9 = arith.addf %6, %8 : vector<2x128xf32>
    %cst_9 = arith.constant 0.000000e+00 : f32
    %10 = vector.broadcast %cst_9 : f32 to vector<2x128xf32>
    %11 = arith.maximumf %9, %10 : vector<2x128xf32>
    %c0_10 = arith.constant 0 : index
    %c0_11 = arith.constant 0 : index
    %12 = vector.load %arg4[%c0_10, %c0_11] : memref<2x128xf32, #tpu.memory_space<vmem>>, vector<2x128xf32>
    tpu.vector_store %arg4[%c0_10, %c0_11], %11 {strides = array<i32>} : memref<2x128xf32, #tpu.memory_space<vmem>>, vector<2x128xf32>,
    return
  }
}

</mosaic_0001>

<llo_original>
// kernel: tpu_custom_call.1
$region0: #{tpu_custom_call.1}
  #allocation0 [shape = 'u32[]', space=smem, size = 0x4, offset = 0x4, fixed_abs, tag = 'smem constant byte address 0x4 - core index']
  #allocation1 [shape = 'u32[144,128]{1,0:T(1,128)}', space=vmem, size = 0x12000, scoped, tag = 'internal scratch']
  %s0 = inlined_call_operand.hbm [shape: f32[2,128], index: 0, kind: input, shape index: {}]
  %s1 = inlined_call_operand.vmem [shape: f32[2,128], index: 1, kind: input, shape index: {}]
  %s2 = inlined_call_operand.hbm [shape: f32[256,128], index: 2, kind: input, shape index: {}]
  %s3 = inlined_call_operand.vmem [shape: f32[1,128], index: 3, kind: input, shape index: {}]
  %s4 = inlined_call_operand.hbm [shape: f32[2,128], index: 4, kind: output, shape index: {}]
  %s5 = sld [smem:[#allocation0]]
  $region34: #{tpu_custom_call.1} parent=0
    _
  %s7 = ssub.s32 1, %s5
  %s8 = scalar_select 0, %s7, %s5
  $region1: #{tpu_custom_call.1} parent=0
    #allocation2 [shape = 'u8[1024]{0}', space=vmem, size = 0x400, scoped, tag = 'input window, operand 0, single buffered']
    #allocation3 [shape = 's32[1]{0}', space=sflag, size = 0x4, scoped, tag = 'scoped memory for tpu_custom_call.1']
    #allocation4 [shape = 's32[1]{0}', space=sflag, size = 0x4, scoped, tag = 'scoped memory for tpu_custom_call.1']
    #allocation5 [shape = 'u8[131072]{0}', space=vmem, size = 0x20000, scoped, tag = 'input window, operand 2, single buffered']
    #allocation6 [shape = 's32[1]{0}', space=sflag, size = 0x4, scoped, tag = 'scoped memory for tpu_custom_call.1']
    #allocation7 [shape = 'u8[1024]{0}', space=vmem, size = 0x400, scoped, tag = 'output window, operand 0, single buffered']
    %9 = vsyncpa [#allocation3], 0
    %10 = vsyncpa [#allocation6], 0
    %11 = vsyncpa [#allocation4], 0
    // Predicated region
    $region2: #{tpu_custom_call.1} parent=1 // pred_check
      _
    $region3: #{tpu_custom_call.1} parent=1 // pred_check_branch
      %13 = sbr.rel (0) target = $region5
    $region4: #{tpu_custom_call.1} parent=1 // pred_region
      %s15 = ssub.s32 32, 32
      %16 = vsyncadd [#allocation3], %s15
      %s18 = sshll.u32 [#allocation2], 4
      %s19 = int_to_ptr.vmem [resolvable:$true] %s18
      %21 = dma.hbm_to_vmem [thread:$0]  %s0, 32, %s19, [#allocation3]
    $region5: #{tpu_custom_call.1} parent=1 // pred_fallthru
      _
    // Predicated region
    $region6: #{tpu_custom_call.1} parent=1 // pred_check
      _
    $region7: #{tpu_custom_call.1} parent=1 // pred_check_branch
      %23 = sbr.rel (0) target = $region9
    $region8: #{tpu_custom_call.1} parent=1 // pred_region
      _
    $region9: #{tpu_custom_call.1} parent=1 // pred_fallthru
      _
    // Predicated region
    $region10: #{tpu_custom_call.1} parent=1 // pred_check
      _
    $region11: #{tpu_custom_call.1} parent=1 // pred_check_branch
      %25 = sbr.rel (0) target = $region13
    $region12: #{tpu_custom_call.1} parent=1 // pred_region
      %s27 = ssub.s32 4096, 4096
      %28 = vsyncadd [#allocation6], %s27
      %s29 = sshll.u32 [#allocation5], 4
      %s30 = int_to_ptr.vmem [resolvable:$true] %s29
      %35 = dma.hbm_to_vmem [thread:$0]  %s2, 4096, %s30, [#allocation6], 128, 128, 8
    $region13: #{tpu_custom_call.1} parent=1 // pred_fallthru
      _
    // Predicated region
    $region14: #{tpu_custom_call.1} parent=1 // pred_check
      _
    $region15: #{tpu_custom_call.1} parent=1 // pred_check_branch
      %37 = sbr.rel (0) target = $region17
    $region16: #{tpu_custom_call.1} parent=1 // pred_region
      _
    $region17: #{tpu_custom_call.1} parent=1 // pred_fallthru
      _
    // Predicated region
    $region18: #{tpu_custom_call.1} parent=1 // pred_check
      _
    $region19: #{tpu_custom_call.1} parent=1 // pred_check_branch
      %39 = sbr.rel (0) target = $region21
    $region20: #{tpu_custom_call.1} parent=1 // pred_region
      %40 = dma.done [#allocation3], 32
    $region21: #{tpu_custom_call.1} parent=1 // pred_fallthru
      _
    // Predicated region
    $region22: #{tpu_custom_call.1} parent=1 // pred_check
      _
    $region23: #{tpu_custom_call.1} parent=1 // pred_check_branch
      %42 = sbr.rel (0) target = $region25
    $region24: #{tpu_custom_call.1} parent=1 // pred_region
      %43 = dma.done [#allocation6], 4096
    $region25: #{tpu_custom_call.1} parent=1 // pred_fallthru
      _
    %v44 = vld [vmem:[#allocation2] sm:$0x3]
    %v45 = vld [vmem:[%s1] sm:$0x3]
    %v46 = vld [vmem:[#allocation5] sm:$0xff]
    %v47 = vld [vmem:[#allocation5 + $0x8] sm:$0xff]
    %v48 = vld [vmem:[#allocation5 + $0x10] sm:$0xff]
    %v49 = vld [vmem:[#allocation5 + $0x18] sm:$0xff]
    %v50 = vld [vmem:[#allocation5 + $0x20] sm:$0xff]
    %v51 = vld [vmem:[#allocation5 + $0x28] sm:$0xff]
    %v52 = vld [vmem:[#allocation5 + $0x30] sm:$0xff]
    %v53 = vld [vmem:[#allocation5 + $0x38] sm:$0xff]
    %v54 = vld [vmem:[#allocation5 + $0x40] sm:$0xff]
    %v55 = vld [vmem:[#allocation5 + $0x48] sm:$0xff]
    %v56 = vld [vmem:[#allocation5 + $0x50] sm:$0xff]
    %v57 = vld [vmem:[#allocation5 + $0x58] sm:$0xff]
    %v58 = vld [vmem:[#allocation5 + $0x60] sm:$0xff]
    %v59 = vld [vmem:[#allocation5 + $0x68] sm:$0xff]
    %v60 = vld [vmem:[#allocation5 + $0x70] sm:$0xff]
    %v61 = vld [vmem:[#allocation5 + $0x78] sm:$0xff]
    %v62 = vld [vmem:[#allocation5 + $0x80] sm:$0xff]
    %v63 = vld [vmem:[#allocation5 + $0x88] sm:$0xff]
    %v64 = vld [vmem:[#allocation5 + $0x90] sm:$0xff]
    %v65 = vld [vmem:[#allocation5 + $0x98] sm:$0xff]
    %v66 = vld [vmem:[#allocation5 + $0xa0] sm:$0xff]
    %v67 = vld [vmem:[#allocation5 + $0xa8] sm:$0xff]
    %v68 = vld [vmem:[#allocation5 + $0xb0] sm:$0xff]
    %v69 = vld [vmem:[#allocation5 + $0xb8] sm:$0xff]
    %v70 = vld [vmem:[#allocation5 + $0xc0] sm:$0xff]
    %v71 = vld [vmem:[#allocation5 + $0xc8] sm:$0xff]
    %v72 = vld [vmem:[#allocation5 + $0xd0] sm:$0xff]
    %v73 = vld [vmem:[#allocation5 + $0xd8] sm:$0xff]
    %v74 = vld [vmem:[#allocation5 + $0xe0] sm:$0xff]
    %v75 = vld [vmem:[#allocation5 + $0xe8] sm:$0xff]
    %v76 = vld [vmem:[#allocation5 + $0xf0] sm:$0xff]
    %v77 = vld [vmem:[#allocation5 + $0xf8] sm:$0xff]
    %78 = vmatprep.subr.mxu0 0.0
    %79 = vmatpush1.msra.mxu0 %v62
    %80 = vmatprep.subr.mxu0 0.0
    %81 = vmatpush1.msra.mxu0 %v63
    %82 = vmatprep.subr.mxu0 0.0
    %83 = vmatpush1.msra.mxu0 %v64
    %84 = vmatprep.subr.mxu0 0.0
    %85 = vmatpush1.msra.mxu0 %v65
    %86 = vmatprep.subr.mxu0 0.0
    %87 = vmatpush1.msra.mxu0 %v66
    %88 = vmatprep.subr.mxu0 0.0
    %89 = vmatpush1.msra.mxu0 %v67
    %90 = vmatprep.subr.mxu0 0.0
    %91 = vmatpush1.msra.mxu0 %v68
    %92 = vmatprep.subr.mxu0 0.0
    %93 = vmatpush1.msra.mxu0 %v69
    %94 = vmatprep.subr.mxu0 0.0
    %95 = vmatpush1.msra.mxu0 %v70
    %96 = vmatprep.subr.mxu0 0.0
    %97 = vmatpush1.msra.mxu0 %v71
    %98 = vmatprep.subr.mxu0 0.0
    %99 = vmatpush1.msra.mxu0 %v72
    %100 = vmatprep.subr.mxu0 0.0
    %101 = vmatpush1.msra.mxu0 %v73
    %102 = vmatprep.subr.mxu0 0.0
    %103 = vmatpush1.msra.mxu0 %v74
    %104 = vmatprep.subr.mxu0 0.0
    %105 = vmatpush1.msra.mxu0 %v75
    %106 = vmatprep.subr.mxu0 0.0
    %107 = vmatpush1.msra.mxu0 %v76
    %108 = vmatprep.subr.mxu0 0.0
    %109 = vmatpush1.msra.mxu0 %v77
    %110 = vmatprep.subr.mxu0 0.0
    %111 = vmatpush1.msra.mxu0 0.0
    %112 = vmatprep.subr.mxu0 0.0
    %113 = vmatpush1.msra.mxu0 0.0
    %114 = vmatprep.subr.mxu0 0.0
    %115 = vmatpush1.msra.mxu0 0.0
    %116 = vmatprep.subr.mxu0 0.0
    %117 = vmatpush1.msra.mxu0 0.0
    %118 = vmatprep.subr.mxu0 0.0
    %119 = vmatpush1.msra.mxu0 0.0
    %120 = vmatprep.subr.mxu0 0.0
    %121 = vmatpush1.msra.mxu0 0.0
    %122 = vmatprep.subr.mxu0 0.0
    %123 = vmatpush1.msra.mxu0 0.0
    %124 = vmatprep.subr.mxu0 0.0
    %125 = vmatpush1.msra.mxu0 0.0
    %126 = vmatprep.subr.mxu0 0.0
    %127 = vmatpush1.msra.mxu0 0.0
    %128 = vmatprep.subr.mxu0 0.0
    %129 = vmatpush1.msra.mxu0 0.0
    %130 = vmatprep.subr.mxu0 0.0
    %131 = vmatpush1.msra.mxu0 0.0
    %132 = vmatprep.subr.mxu0 0.0
    %133 = vmatpush1.msra.mxu0 0.0
    %134 = vmatprep.subr.mxu0 0.0
    %135 = vmatpush1.msra.mxu0 0.0
    %136 = vmatprep.subr.mxu0 0.0
    %137 = vmatpush1.msra.mxu0 0.0
    %138 = vmatprep.subr.mxu0 0.0
    %139 = vmatpush1.msra.mxu0 0.0
    %140 = vmatprep.subr.mxu0 0.0
    %141 = vmatpush1.msra.mxu0 0.0
    %142 = vmatprep.mubr.f32.mxu0 0.0
    %143 = vmatmul.mubr.f32.gmra.mrb[0].mxu0 %v45
    %v144 = vpop.f32.mrb[0].mxu0
    %v145 = vadd.f32 0.0, %v144
    %v146 = vpop.f32.mrb[0].mxu0
    %147 = vdwg.mxu0
    %148 = vmatprep.subr.mxu0 0.0
    %149 = vmatpush1.msra.mxu0 %v46
    %150 = vmatprep.subr.mxu0 0.0
    %151 = vmatpush1.msra.mxu0 %v47
    %152 = vmatprep.subr.mxu0 0.0
    %153 = vmatpush1.msra.mxu0 %v48
    %154 = vmatprep.subr.mxu0 0.0
    %155 = vmatpush1.msra.mxu0 %v49
    %156 = vmatprep.subr.mxu0 0.0
    %157 = vmatpush1.msra.mxu0 %v50
    %158 = vmatprep.subr.mxu0 0.0
    %159 = vmatpush1.msra.mxu0 %v51
    %160 = vmatprep.subr.mxu0 0.0
    %161 = vmatpush1.msra.mxu0 %v52
    %162 = vmatprep.subr.mxu0 0.0
    %163 = vmatpush1.msra.mxu0 %v53
    %164 = vmatprep.subr.mxu0 0.0
    %165 = vmatpush1.msra.mxu0 %v54
    %166 = vmatprep.subr.mxu0 0.0
    %167 = vmatpush1.msra.mxu0 %v55
    %168 = vmatprep.subr.mxu0 0.0
    %169 = vmatpush1.msra.mxu0 %v56
    %170 = vmatprep.subr.mxu0 0.0
    %171 = vmatpush1.msra.mxu0 %v57
    %172 = vmatprep.subr.mxu0 0.0
    %173 = vmatpush1.msra.mxu0 %v58
    %174 = vmatprep.subr.mxu0 0.0
    %175 = vmatpush1.msra.mxu0 %v59
    %176 = vmatprep.subr.mxu0 0.0
    %177 = vmatpush1.msra.mxu0 %v60
    %178 = vmatprep.subr.mxu0 0.0
    %179 = vmatpush1.msra.mxu0 %v61
    %180 = vmatprep.subr.mxu0 0.0
    %181 = vmatpush1.msra.mxu0 0.0
    %182 = vmatprep.subr.mxu0 0.0
    %183 = vmatpush1.msra.mxu0 0.0
    %184 = vmatprep.subr.mxu0 0.0
    %185 = vmatpush1.msra.mxu0 0.0
    %186 = vmatprep.subr.mxu0 0.0
    %187 = vmatpush1.msra.mxu0 0.0
    %188 = vmatprep.subr.mxu0 0.0
    %189 = vmatpush1.msra.mxu0 0.0
    %190 = vmatprep.subr.mxu0 0.0
    %191 = vmatpush1.msra.mxu0 0.0
    %192 = vmatprep.subr.mxu0 0.0
    %193 = vmatpush1.msra.mxu0 0.0
    %194 = vmatprep.subr.mxu0 0.0
    %195 = vmatpush1.msra.mxu0 0.0
    %196 = vmatprep.subr.mxu0 0.0
    %197 = vmatpush1.msra.mxu0 0.0
    %198 = vmatprep.subr.mxu0 0.0
    %199 = vmatpush1.msra.mxu0 0.0
    %200 = vmatprep.subr.mxu0 0.0
    %201 = vmatpush1.msra.mxu0 0.0
    %202 = vmatprep.subr.mxu0 0.0
    %203 = vmatpush1.msra.mxu0 0.0
    %204 = vmatprep.subr.mxu0 0.0
    %205 = vmatpush1.msra.mxu0 0.0
    %206 = vmatprep.subr.mxu0 0.0
    %207 = vmatpush1.msra.mxu0 0.0
    %208 = vmatprep.subr.mxu0 0.0
    %209 = vmatpush1.msra.mxu0 0.0
    %210 = vmatprep.subr.mxu0 0.0
    %211 = vmatpush1.msra.mxu0 0.0
    %212 = vmatprep.mubr.f32.mxu0 0.0
    %213 = vmatmul.mubr.f32.gmra.mrb[0].mxu0 %v44
    %v214 = vpop.f32.mrb[0].mxu0
    %v215 = vadd.f32 %v145, %v214
    %v216 = vpop.f32.mrb[0].mxu0
    %217 = vdwg.mxu0
    %v218 = vld [vmem:[%s3] sm:$0x1]
    %v220 = vlaneseq
    %v221 = vshrl.u32 %v220, 7
    %v222 = vsub.s32 0, %v221
    %v223 = vrot.slane %v218, %v222
    %v225 = vadd.f32 %v215, %v223
    %v226 = vmax.f32 %v225, 0.0
    %227 = vst [vmem:[#allocation7] sm:$0x3] %v226
    // Predicated region
    $region26: #{tpu_custom_call.1} parent=1 // pred_check
      _
    $region27: #{tpu_custom_call.1} parent=1 // pred_check_branch
      %229 = sbr.rel (0) target = $region29
    $region28: #{tpu_custom_call.1} parent=1 // pred_region
      %s231 = ssub.s32 32, 32
      %232 = vsyncadd [#allocation4], %s231
      %s234 = sshll.u32 [#allocation7], 4
      %s235 = int_to_ptr.vmem [resolvable:$true] %s234
      %237 = dma.vmem_to_hbm [thread:$0]  %s235, 32, %s4, [#allocation4]
    $region29: #{tpu_custom_call.1} parent=1 // pred_fallthru
      _
    // Predicated region
    $region30: #{tpu_custom_call.1} parent=1 // pred_check
      _
    $region31: #{tpu_custom_call.1} parent=1 // pred_check_branch
      %239 = sbr.rel (0) target = $region33
    $region32: #{tpu_custom_call.1} parent=1 // pred_region
      %240 = dma.done [#allocation4], 32
    $region33: #{tpu_custom_call.1} parent=1 // pred_fallthru
      _
    %241 = vsyncpa [#allocation3], 1
    %242 = vsyncpa [#allocation6], 1
    %243 = vsyncpa [#allocation4], 1

</llo_original>
